<compile_context>
chip_gen: v6e
topology: v6e:2x2x1
jax: 0.10.0
libtpu: 0.0.40
codegen_flags: <defaults>
</compile_context>

<pallas_src>
import jax
import jax.numpy as jnp
from jax.experimental import pallas as pl
from jax.experimental.pallas import tpu as pltpu

# Small synthetic BERT-like config (real BERT-base: H=768, V=30522).
B = 2        # batch
S = 8        # sequence length
H = 128      # hidden size
V = 512      # vocab size
N = B * S    # fused batch*seq rows fed to the MXU (multiple of 8)
TV = 256     # vocab tile (multiple of 128, lane-dense output); V // TV = 2 tiles


def _summarizer_kernel(ids_ref, emb_ref, w_ref, b_ref, out_ref, x_scratch):
    """ids_ref: (N,) int32 SMEM; emb_ref: (V,H) f32; w_ref: (H,TV) bf16;
    b_ref: (1,TV) f32; out_ref: (N,TV) f32; x_scratch: (N,H) f32 VMEM."""
    # Row gather: N dynamic-slice reads from the VMEM-resident table, driven by
    # SMEM scalars.  O(N*H) work, cheap enough to redo per vocab tile, which keeps
    # the vocab axis safely "parallel" (no cross-step scratch dependency).
    for i in range(N):                         # static trip count / static store index
        tok = ids_ref[i]                       # dynamic scalar from SMEM
        x_scratch[pl.ds(i, 1), :] = emb_ref[pl.ds(tok, 1), :]

    x = x_scratch[...].astype(jnp.bfloat16)    # (N, H) one cheap cast, 2 vregs
    # Linear layer on this vocab tile: (N, H) @ (H, TV) + bias, f32 accumulation.
    out_ref[...] = (
        jnp.dot(x, w_ref[...], preferred_element_type=jnp.float32) + b_ref[...]
    )                                          # lane-dense unmasked store


def text_summarizer_forward(token_ids, emb_table, fc_w, fc_b):
    """token_ids: (B,S) int; emb_table: (V,H) f32; fc_w: (H,V) f32; fc_b: (1,V) f32.
    Returns (B, S, V) f32 logits."""
    # nn.Embedding would error/UB on out-of-range ids; clamp so the in-kernel
    # dynamic row read never goes out of bounds (VMEM OOB is unchecked).
    ids = jnp.clip(token_ids.reshape(N).astype(jnp.int32), 0, V - 1)
    emb_f32 = emb_table.astype(jnp.float32)
    w_bf16 = fc_w.astype(jnp.bfloat16)
    bias = fc_b.astype(jnp.float32).reshape(1, V)

    flops = 2 * N * H * V                       # fc matmul only; gather is copies
    bytes_accessed = (emb_f32.size * 4 + w_bf16.size * 2 + bias.size * 4
                      + ids.size * 4 + N * V * 4)

    out = pl.pallas_call(
        _summarizer_kernel,
        out_shape=jax.ShapeDtypeStruct((N, V), jnp.float32),
        grid_spec=pltpu.PrefetchScalarGridSpec(
            num_scalar_prefetch=1,                              # ids -> SMEM
            grid=(V // TV,),                                    # parallel vocab tiles
            in_specs=[
                pl.BlockSpec((V, H), lambda j, ids: (0, 0)),    # embedding table (constant)
                pl.BlockSpec((H, TV), lambda j, ids: (0, j)),   # fc weight vocab tile
                pl.BlockSpec((1, TV), lambda j, ids: (0, j)),   # fc bias vocab tile
            ],
            out_specs=pl.BlockSpec((N, TV), lambda j, ids: (0, j)),
            scratch_shapes=[pltpu.VMEM((N, H), jnp.float32)],   # gathered activations
        ),
        compiler_params=pltpu.CompilerParams(
            dimension_semantics=("parallel",)),
        cost_estimate=pl.CostEstimate(
            flops=flops, transcendentals=0, bytes_accessed=bytes_accessed),
    )(ids, emb_f32, w_bf16, bias)
    return out.reshape(B, S, V)


if __name__ == "__main__":
    key = jax.random.PRNGKey(0)
    k_ids, k_emb, k_w, k_b = jax.random.split(key, 4)

    # Inputs: token ids, as PyTorch `summary_embedding` passed to nn.Embedding.
    token_ids = jax.random.randint(k_ids, (B, S), 0, V, dtype=jnp.int32)

    # Deterministic synthetic parameters (shapes from the module's __init__);
    # fc_w is stored as (H, V) = transpose of PyTorch's (out, in) layout.
    emb_table = jax.random.normal(k_emb, (V, H), dtype=jnp.float32) * 0.02
    bound = 1.0 / (H ** 0.5)
    fc_w = jax.random.uniform(k_w, (H, V), jnp.float32, -bound, bound)
    fc_b = jax.random.uniform(k_b, (1, V), jnp.float32, -bound, bound)

    out = text_summarizer_forward(token_ids, emb_table, fc_w, fc_b)
    out = jax.block_until_ready(out)

    # Pure-JAX reference with the same bf16 matmul operands and f32 bias add.
    x_ref = jnp.take(emb_table, token_ids.reshape(-1), axis=0)            # exact f32 gather
    x_ref = x_ref.astype(jnp.bfloat16).astype(jnp.float32)
    w_ref = fc_w.astype(jnp.bfloat16).astype(jnp.float32)
    ref = (x_ref @ w_ref + fc_b[0]).reshape(B, S, V)

    assert out.shape == (B, S, V)
    assert jnp.allclose(out, ref, atol=1e-2, rtol=1e-2)

    print("KERNEL_OK")
</pallas_src>

<mosaic_0001>
module attributes {stable_mosaic.version = 11 : i64} {
  func.func @_summarizer_kernel(%arg0: i32, %arg1: memref<16xi32, #tpu.memory_space<smem>>, %arg2: memref<512x128xf32, #tpu.memory_space<vmem>>, %arg3: memref<128x256xbf16, #tpu.memory_space<vmem>>, %arg4: memref<1x256xf32, #tpu.memory_space<vmem>>, %arg5: memref<16x256xf32, #tpu.memory_space<vmem>>, %arg6: memref<16x128xf32, #tpu.memory_space<vmem>>) attributes {dimension_semantics = [#tpu.dimension_semantics<parallel>], iteration_bounds = array<i64: 2>, scalar_prefetch = 1 : i64, scratch_operands = 1 : i64, tpu.core_type = #tpu.core_type<tc>, window_params = [{pipeline_mode = #tpu.pipeline_mode<synchronous>, transform_indices = @transform_0, window_bounds = array<i64: 512, 128>}, {transform_indices = @transform_1, window_bounds = array<i64: 128, 256>}, {transform_indices = @transform_2, window_bounds = array<i64: 1, 256>}, {transform_indices = @transform_3, window_bounds = array<i64: 16, 256>}]} {
    %c0 = arith.constant 0 : index
    %0 = memref.load %arg1[%c0] : memref<16xi32, #tpu.memory_space<smem>>
    %1 = arith.index_cast %0 : i32 to index
    %c0_0 = arith.constant 0 : index
    %2 = vector.load %arg2[%1, %c0_0] : memref<512x128xf32, #tpu.memory_space<vmem>>, vector<1x128xf32>
    %c0_1 = arith.constant 0 : index
    %c0_2 = arith.constant 0 : index
    %3 = vector.load %arg6[%c0_1, %c0_2] : memref<16x128xf32, #tpu.memory_space<vmem>>, vector<1x128xf32>
    tpu.vector_store %arg6[%c0_1, %c0_2], %2 {strides = array<i32>} : memref<16x128xf32, #tpu.memory_space<vmem>>, vector<1x128xf32>,
    %c1 = arith.constant 1 : index
    %4 = memref.load %arg1[%c1] : memref<16xi32, #tpu.memory_space<smem>>
    %5 = arith.index_cast %4 : i32 to index
    %c0_3 = arith.constant 0 : index
    %6 = vector.load %arg2[%5, %c0_3] : memref<512x128xf32, #tpu.memory_space<vmem>>, vector<1x128xf32>
    %c1_4 = arith.constant 1 : index
    %c0_5 = arith.constant 0 : index
    %7 = vector.load %arg6[%c1_4, %c0_5] : memref<16x128xf32, #tpu.memory_space<vmem>>, vector<1x128xf32>
    tpu.vector_store %arg6[%c1_4, %c0_5], %6 {strides = array<i32>} : memref<16x128xf32, #tpu.memory_space<vmem>>, vector<1x128xf32>,
    %c2 = arith.constant 2 : index
    %8 = memref.load %arg1[%c2] : memref<16xi32, #tpu.memory_space<smem>>
    %9 = arith.index_cast %8 : i32 to index
    %c0_6 = arith.constant 0 : index
    %10 = vector.load %arg2[%9, %c0_6] : memref<512x128xf32, #tpu.memory_space<vmem>>, vector<1x128xf32>
    %c2_7 = arith.constant 2 : index
    %c0_8 = arith.constant 0 : index
    %11 = vector.load %arg6[%c2_7, %c0_8] : memref<16x128xf32, #tpu.memory_space<vmem>>, vector<1x128xf32>
    tpu.vector_store %arg6[%c2_7, %c0_8], %10 {strides = array<i32>} : memref<16x128xf32, #tpu.memory_space<vmem>>, vector<1x128xf32>,
    %c3 = arith.constant 3 : index
    %12 = memref.load %arg1[%c3] : memref<16xi32, #tpu.memory_space<smem>>
    %13 = arith.index_cast %12 : i32 to index
    %c0_9 = arith.constant 0 : index
    %14 = vector.load %arg2[%13, %c0_9] : memref<512x128xf32, #tpu.memory_space<vmem>>, vector<1x128xf32>
    %c3_10 = arith.constant 3 : index
    %c0_11 = arith.constant 0 : index
    %15 = vector.load %arg6[%c3_10, %c0_11] : memref<16x128xf32, #tpu.memory_space<vmem>>, vector<1x128xf32>
    tpu.vector_store %arg6[%c3_10, %c0_11], %14 {strides = array<i32>} : memref<16x128xf32, #tpu.memory_space<vmem>>, vector<1x128xf32>,
    %c4 = arith.constant 4 : index
    %16 = memref.load %arg1[%c4] : memref<16xi32, #tpu.memory_space<smem>>
    %17 = arith.index_cast %16 : i32 to index
    %c0_12 = arith.constant 0 : index
    %18 = vector.load %arg2[%17, %c0_12] : memref<512x128xf32, #tpu.memory_space<vmem>>, vector<1x128xf32>
    %c4_13 = arith.constant 4 : index
    %c0_14 = arith.constant 0 : index
    %19 = vector.load %arg6[%c4_13, %c0_14] : memref<16x128xf32, #tpu.memory_space<vmem>>, vector<1x128xf32>
    tpu.vector_store %arg6[%c4_13, %c0_14], %18 {strides = array<i32>} : memref<16x128xf32, #tpu.memory_space<vmem>>, vector<1x128xf32>,
    %c5 = arith.constant 5 : index
    %20 = memref.load %arg1[%c5] : memref<16xi32, #tpu.memory_space<smem>>
    %21 = arith.index_cast %20 : i32 to index
    %c0_15 = arith.constant 0 : index
    %22 = vector.load %arg2[%21, %c0_15] : memref<512x128xf32, #tpu.memory_space<vmem>>, vector<1x128xf32>
    %c5_16 = arith.constant 5 : index
    %c0_17 = arith.constant 0 : index
    %23 = vector.load %arg6[%c5_16, %c0_17] : memref<16x128xf32, #tpu.memory_space<vmem>>, vector<1x128xf32>
    tpu.vector_store %arg6[%c5_16, %c0_17], %22 {strides = array<i32>} : memref<16x128xf32, #tpu.memory_space<vmem>>, vector<1x128xf32>,
    %c6 = arith.constant 6 : index
    %24 = memref.load %arg1[%c6] : memref<16xi32, #tpu.memory_space<smem>>
    %25 = arith.index_cast %24 : i32 to index
    %c0_18 = arith.constant 0 : index
    %26 = vector.load %arg2[%25, %c0_18] : memref<512x128xf32, #tpu.memory_space<vmem>>, vector<1x128xf32>
    %c6_19 = arith.constant 6 : index
    %c0_20 = arith.constant 0 : index
    %27 = vector.load %arg6[%c6_19, %c0_20] : memref<16x128xf32, #tpu.memory_space<vmem>>, vector<1x128xf32>
    tpu.vector_store %arg6[%c6_19, %c0_20], %26 {strides = array<i32>} : memref<16x128xf32, #tpu.memory_space<vmem>>, vector<1x128xf32>,
    %c7 = arith.constant 7 : index
    %28 = memref.load %arg1[%c7] : memref<16xi32, #tpu.memory_space<smem>>
    %29 = arith.index_cast %28 : i32 to index
    %c0_21 = arith.constant 0 : index
    %30 = vector.load %arg2[%29, %c0_21] : memref<512x128xf32, #tpu.memory_space<vmem>>, vector<1x128xf32>
    %c7_22 = arith.constant 7 : index
    %c0_23 = arith.constant 0 : index
    %31 = vector.load %arg6[%c7_22, %c0_23] : memref<16x128xf32, #tpu.memory_space<vmem>>, vector<1x128xf32>
    tpu.vector_store %arg6[%c7_22, %c0_23], %30 {strides = array<i32>} : memref<16x128xf32, #tpu.memory_space<vmem>>, vector<1x128xf32>,
    %c8 = arith.constant 8 : index
    %32 = memref.load %arg1[%c8] : memref<16xi32, #tpu.memory_space<smem>>
    %33 = arith.index_cast %32 : i32 to index
    %c0_24 = arith.constant 0 : index
    %34 = vector.load %arg2[%33, %c0_24] : memref<512x128xf32, #tpu.memory_space<vmem>>, vector<1x128xf32>
    %c8_25 = arith.constant 8 : index
    %c0_26 = arith.constant 0 : index
    %35 = vector.load %arg6[%c8_25, %c0_26] : memref<16x128xf32, #tpu.memory_space<vmem>>, vector<1x128xf32>
    tpu.vector_store %arg6[%c8_25, %c0_26], %34 {strides = array<i32>} : memref<16x128xf32, #tpu.memory_space<vmem>>, vector<1x128xf32>,
    %c9 = arith.constant 9 : index
    %36 = memref.load %arg1[%c9] : memref<16xi32, #tpu.memory_space<smem>>
    %37 = arith.index_cast %36 : i32 to index
    %c0_27 = arith.constant 0 : index
    %38 = vector.load %arg2[%37, %c0_27] : memref<512x128xf32, #tpu.memory_space<vmem>>, vector<1x128xf32>
    %c9_28 = arith.constant 9 : index
    %c0_29 = arith.constant 0 : index
    %39 = vector.load %arg6[%c9_28, %c0_29] : memref<16x128xf32, #tpu.memory_space<vmem>>, vector<1x128xf32>
    tpu.vector_store %arg6[%c9_28, %c0_29], %38 {strides = array<i32>} : memref<16x128xf32, #tpu.memory_space<vmem>>, vector<1x128xf32>,
    %c10 = arith.constant 10 : index
    %40 = memref.load %arg1[%c10] : memref<16xi32, #tpu.memory_space<smem>>
    %41 = arith.index_cast %40 : i32 to index
    %c0_30 = arith.constant 0 : index
    %42 = vector.load %arg2[%41, %c0_30] : memref<512x128xf32, #tpu.memory_space<vmem>>, vector<1x128xf32>
    %c10_31 = arith.constant 10 : index
    %c0_32 = arith.constant 0 : index
    %43 = vector.load %arg6[%c10_31, %c0_32] : memref<16x128xf32, #tpu.memory_space<vmem>>, vector<1x128xf32>
    tpu.vector_store %arg6[%c10_31, %c0_32], %42 {strides = array<i32>} : memref<16x128xf32, #tpu.memory_space<vmem>>, vector<1x128xf32>,
    %c11 = arith.constant 11 : index
    %44 = memref.load %arg1[%c11] : memref<16xi32, #tpu.memory_space<smem>>
    %45 = arith.index_cast %44 : i32 to index
    %c0_33 = arith.constant 0 : index
    %46 = vector.load %arg2[%45, %c0_33] : memref<512x128xf32, #tpu.memory_space<vmem>>, vector<1x128xf32>
    %c11_34 = arith.constant 11 : index
    %c0_35 = arith.constant 0 : index
    %47 = vector.load %arg6[%c11_34, %c0_35] : memref<16x128xf32, #tpu.memory_space<vmem>>, vector<1x128xf32>
    tpu.vector_store %arg6[%c11_34, %c0_35], %46 {strides = array<i32>} : memref<16x128xf32, #tpu.memory_space<vmem>>, vector<1x128xf32>,
    %c12 = arith.constant 12 : index
    %48 = memref.load %arg1[%c12] : memref<16xi32, #tpu.memory_space<smem>>
    %49 = arith.index_cast %48 : i32 to index
    %c0_36 = arith.constant 0 : index
    %50 = vector.load %arg2[%49, %c0_36] : memref<512x128xf32, #tpu.memory_space<vmem>>, vector<1x128xf32>
    %c12_37 = arith.constant 12 : index
    %c0_38 = arith.constant 0 : index
    %51 = vector.load %arg6[%c12_37, %c0_38] : memref<16x128xf32, #tpu.memory_space<vmem>>, vector<1x128xf32>
    tpu.vector_store %arg6[%c12_37, %c0_38], %50 {strides = array<i32>} : memref<16x128xf32, #tpu.memory_space<vmem>>, vector<1x128xf32>,
    %c13 = arith.constant 13 : index
    %52 = memref.load %arg1[%c13] : memref<16xi32, #tpu.memory_space<smem>>
    %53 = arith.index_cast %52 : i32 to index
    %c0_39 = arith.constant 0 : index
    %54 = vector.load %arg2[%53, %c0_39] : memref<512x128xf32, #tpu.memory_space<vmem>>, vector<1x128xf32>
    %c13_40 = arith.constant 13 : index
    %c0_41 = arith.constant 0 : index
    %55 = vector.load %arg6[%c13_40, %c0_41] : memref<16x128xf32, #tpu.memory_space<vmem>>, vector<1x128xf32>
    tpu.vector_store %arg6[%c13_40, %c0_41], %54 {strides = array<i32>} : memref<16x128xf32, #tpu.memory_space<vmem>>, vector<1x128xf32>,
    %c14 = arith.constant 14 : index
    %56 = memref.load %arg1[%c14] : memref<16xi32, #tpu.memory_space<smem>>
    %57 = arith.index_cast %56 : i32 to index
    %c0_42 = arith.constant 0 : index
    %58 = vector.load %arg2[%57, %c0_42] : memref<512x128xf32, #tpu.memory_space<vmem>>, vector<1x128xf32>
    %c14_43 = arith.constant 14 : index
    %c0_44 = arith.constant 0 : index
    %59 = vector.load %arg6[%c14_43, %c0_44] : memref<16x128xf32, #tpu.memory_space<vmem>>, vector<1x128xf32>
    tpu.vector_store %arg6[%c14_43, %c0_44], %58 {strides = array<i32>} : memref<16x128xf32, #tpu.memory_space<vmem>>, vector<1x128xf32>,
    %c15 = arith.constant 15 : index
    %60 = memref.load %arg1[%c15] : memref<16xi32, #tpu.memory_space<smem>>
    %61 = arith.index_cast %60 : i32 to index
    %c0_45 = arith.constant 0 : index
    %62 = vector.load %arg2[%61, %c0_45] : memref<512x128xf32, #tpu.memory_space<vmem>>, vector<1x128xf32>
    %c15_46 = arith.constant 15 : index
    %c0_47 = arith.constant 0 : index
    %63 = vector.load %arg6[%c15_46, %c0_47] : memref<16x128xf32, #tpu.memory_space<vmem>>, vector<1x128xf32>
    tpu.vector_store %arg6[%c15_46, %c0_47], %62 {strides = array<i32>} : memref<16x128xf32, #tpu.memory_space<vmem>>, vector<1x128xf32>,
    %c0_48 = arith.constant 0 : index
    %c0_49 = arith.constant 0 : index
    %64 = vector.load %arg6[%c0_48, %c0_49] : memref<16x128xf32, #tpu.memory_space<vmem>>, vector<16x128xf32>
    %65 = arith.truncf %64 : vector<16x128xf32> to vector<16x128xbf16>
    %c0_50 = arith.constant 0 : index
    %c0_51 = arith.constant 0 : index
    %66 = vector.load %arg3[%c0_50, %c0_51] : memref<128x256xbf16, #tpu.memory_space<vmem>>, vector<128x256xbf16>
    %cst = arith.constant dense<0.000000e+00> : vector<16x256xf32>
    %67 = tpu.matmul %65, %66, %cst {dimension_numbers = #tpu.dot_dimension_numbers<[1], [0], [0], [1], [0, 0, 1, 1], [], []>} : vector<16x128xbf16>, vector<128x256xbf16>, vector<16x256xf32> -> vector<16x256xf32>
    %c0_52 = arith.constant 0 : index
    %c0_53 = arith.constant 0 : index
    %68 = vector.load %arg4[%c0_52, %c0_53] : memref<1x256xf32, #tpu.memory_space<vmem>>, vector<1x256xf32>
    %69 = vector.broadcast %68 : vector<1x256xf32> to vector<16x256xf32>
    %70 = arith.addf %67, %69 : vector<16x256xf32>
    %c0_54 = arith.constant 0 : index
    %c0_55 = arith.constant 0 : index
    %71 = vector.load %arg5[%c0_54, %c0_55] : memref<16x256xf32, #tpu.memory_space<vmem>>, vector<16x256xf32>
    tpu.vector_store %arg5[%c0_54, %c0_55], %70 {strides = array<i32>} : memref<16x256xf32, #tpu.memory_space<vmem>>, vector<16x256xf32>,
    return
  }
  func.func @transform_0(%arg0: i32, %arg1: memref<16xi32, #tpu.memory_space<smem>>) -> (i32, i32) {
    %c0_i32 = arith.constant 0 : i32
    %c0_i32_0 = arith.constant 0 : i32
    %c0_i32_1 = arith.constant 0 : i32
    return %c0_i32, %c0_i32_0 : i32, i32
  }
  func.func @transform_1(%arg0: i32, %arg1: memref<16xi32, #tpu.memory_space<smem>>) -> (i32, i32) {
    %c0_i32 = arith.constant 0 : i32
    %c0_i32_0 = arith.constant 0 : i32
    return %c0_i32, %arg0 : i32, i32
  }
  func.func @transform_2(%arg0: i32, %arg1: memref<16xi32, #tpu.memory_space<smem>>) -> (i32, i32) {
    %c0_i32 = arith.constant 0 : i32
    %c0_i32_0 = arith.constant 0 : i32
    return %c0_i32, %arg0 : i32, i32
  }
  func.func @transform_3(%arg0: i32, %arg1: memref<16xi32, #tpu.memory_space<smem>>) -> (i32, i32) {
    %c0_i32 = arith.constant 0 : i32
    %c0_i32_0 = arith.constant 0 : i32
    return %c0_i32, %arg0 : i32, i32
  }
}

</mosaic_0001>

<llo_original>
// kernel: tpu_custom_call.1
$region0: #{tpu_custom_call.1}
  #allocation0 [shape = 'u32[]', space=smem, size = 0x4, offset = 0x4, fixed_abs, tag = 'smem constant byte address 0x4 - core index']
  #allocation1 [shape = 'u32[144,128]{1,0:T(1,128)}', space=vmem, size = 0x12000, scoped, tag = 'internal scratch']
  #allocation2 [shape = 'f32[16,128]{1,0:T(8,128)}', space=vmem, size = 0x2000, scoped, tag = 'scratch operand']
  #allocation3 [shape = 's32[1]{0}', space=sflag, size = 0x4, scoped, tag = 'scoped memory for tpu_custom_call.1']
  #allocation4 [shape = 'u8[512]{0}', space=smem, size = 0x200, scoped, tag = 'prefetched SMEM operand 0']
  %s0 = inlined_call_operand.hbm [shape: s32[16], index: 0, kind: input, shape index: {}]
  %s1 = inlined_call_operand.hbm [shape: f32[512,128], index: 1, kind: input, shape index: {}]
  %s2 = inlined_call_operand.hbm [shape: bf16[128,512], index: 2, kind: input, shape index: {}]
  %s3 = inlined_call_operand.vmem [shape: f32[1,512], index: 3, kind: input, shape index: {}]
  %s4 = inlined_call_operand.hbm [shape: f32[16,512], index: 4, kind: output, shape index: {}]
  %s5 = sld [smem:[#allocation0]]
  $region53: #{tpu_custom_call.1} parent=0
    _
  %s7 = ssub.s32 1, %s5
  %s8 = scalar_select 0, %s7, %s5
  %10 = dma.hbm_to_smem %s0, 16, [#allocation4], [#allocation3]
  %11 = dma.done [#allocation3], 16
  %12 = sfence
  $region1: #{tpu_custom_call.1} parent=0
    #allocation5 [shape = 'u8[262144]{0}', space=vmem, size = 0x40000, scoped, tag = 'input window, operand 1, single buffered']
    #allocation6 [shape = 's32[2]{0}', space=sflag, size = 0x8, scoped, tag = 'scoped memory for tpu_custom_call.1']
    #allocation7 [shape = 's32[2]{0}', space=sflag, size = 0x8, scoped, tag = 'scoped memory for tpu_custom_call.1']
    #allocation8 [shape = 'u8[131072]{0}', space=vmem, size = 0x20000, scoped, tag = 'input window, operand 2']
    #allocation9 [shape = 's32[2]{0}', space=sflag, size = 0x8, scoped, tag = 'scoped memory for tpu_custom_call.1']
    #allocation10 [shape = 'u8[32768]{0}', space=vmem, size = 0x8000, scoped, tag = 'output window, operand 0']
    %13 = vsyncpa [#allocation6], 0
    %14 = vsyncpa [#allocation9], 0
    %s15 = scalar_lea.sflag [#allocation9], 1
    %16 = vsyncpa %s15, 0
    %17 = vsyncpa [#allocation7], 0
    %s18 = scalar_lea.sflag [#allocation7], 1
    %19 = vsyncpa %s18, 0
    loop: start=0, step=1, limit=4
    $region2: #{tpu_custom_call.1} parent=1 // loop_pre_header
      _
    $region3: #{tpu_custom_call.1} parent=1 // loop_header
      %s21 = sphi 0, %s25
      %p22 = scmp.ge.s32.totalorder %s21, 4
      %s29 = sphi 0, %s29
      %s31 = sphi 0, %s29
      %s32 = sphi 0, %s31
      %s46 = sphi 0, %s32
      %s52 = sphi 0, %s54
      %s55 = sphi 0, %s52
      %s56 = sphi 0, %s55
      %s72 = sphi 0, %s56
      %s78 = sphi 0, %s80
      %s81 = sphi 0, %s78
      %s82 = sphi 0, %s81
      %s98 = sphi 0, %s82
      %s104 = sphi 0, %s106
      %s107 = sphi 0, %s104
      %s108 = sphi 0, %s107
      %s124 = sphi 0, %s108
    $region4: #{tpu_custom_call.1} parent=1 // loop_header_branch
      %24 = sbr.rel (%p22) target = $region8
    $region5: #{tpu_custom_call.1} parent=1 // loop_body
      %s26 = ssub.s32 %s21, 1
      %s27 = ssub.s32 %s21, 2
      %s28 = sadd.s32 %s21, 1
      %s30 = sadd.s32 %s29, 1
      %p33 = scmp.eq.s32.totalorder %s21, 1
      %p34 = scmp.ne.s32.totalorder %s29, %s31
      %p35 = scmp.eq.s32.totalorder %s21, 0
      %p36 = por %p34, %p35
      %p37 = scmp.ne.s32.totalorder %s29, %s31
      %p38 = scmp.eq.s32.totalorder %s26, 1
      %p39 = por %p37, %p38
      %p40 = scmp.ne.s32.totalorder %s31, %s32
      %p41 = scmp.eq.s32.totalorder %s26, 0
      %p42 = por %p40, %p41
      %p43 = scmp.ne.s32.totalorder %s31, %s32
      %p44 = scmp.eq.s32.totalorder %s27, 1
      %p45 = por %p43, %p44
      %p47 = scmp.ne.s32.totalorder %s32, %s46
      %p48 = scmp.eq.s32.totalorder %s27, 0
      %p49 = por %p47, %p48
      %s50 = ssub.s32 %s21, %s28
      %p51 = scmp.eq.s32.totalorder %s50, 0
      %s53 = sadd.s32 %s52, 1
      %s54 = scalar_select %p51, %s52, %s53
      %p57 = pneg %p51
      %p58 = scmp.eq.s32.totalorder %s21, 1
      %p59 = por %p57, %p58
      %p60 = scmp.ne.s32.totalorder %s52, %s55
      %p61 = scmp.eq.s32.totalorder %s21, 0
      %p62 = por %p60, %p61
      %p63 = scmp.ne.s32.totalorder %s52, %s55
      %p64 = scmp.eq.s32.totalorder %s26, 1
      %p65 = por %p63, %p64
      %p66 = scmp.ne.s32.totalorder %s55, %s56
      %p67 = scmp.eq.s32.totalorder %s26, 0
      %p68 = por %p66, %p67
      %p69 = scmp.ne.s32.totalorder %s55, %s56
      %p70 = scmp.eq.s32.totalorder %s27, 1
      %p71 = por %p69, %p70
      %p73 = scmp.ne.s32.totalorder %s56, %s72
      %p74 = scmp.eq.s32.totalorder %s27, 0
      %p75 = por %p73, %p74
      %s76 = ssub.s32 %s21, %s28
      %p77 = scmp.eq.s32.totalorder %s76, 0
      %s79 = sadd.s32 %s78, 1
      %s80 = scalar_select %p77, %s78, %s79
      %p83 = pneg %p77
      %p84 = scmp.eq.s32.totalorder %s21, 1
      %p85 = por %p83, %p84
      %p86 = scmp.ne.s32.totalorder %s78, %s81
      %p87 = scmp.eq.s32.totalorder %s21, 0
      %p88 = por %p86, %p87
      %p89 = scmp.ne.s32.totalorder %s78, %s81
      %p90 = scmp.eq.s32.totalorder %s26, 1
      %p91 = por %p89, %p90
      %p92 = scmp.ne.s32.totalorder %s81, %s82
      %p93 = scmp.eq.s32.totalorder %s26, 0
      %p94 = por %p92, %p93
      %p95 = scmp.ne.s32.totalorder %s81, %s82
      %p96 = scmp.eq.s32.totalorder %s27, 1
      %p97 = por %p95, %p96
      %p99 = scmp.ne.s32.totalorder %s82, %s98
      %p100 = scmp.eq.s32.totalorder %s27, 0
      %p101 = por %p99, %p100
      %s102 = ssub.s32 %s21, %s28
      %p103 = scmp.eq.s32.totalorder %s102, 0
      %s105 = sadd.s32 %s104, 1
      %s106 = scalar_select %p103, %s104, %s105
      %p109 = pneg %p103
      %p110 = scmp.eq.s32.totalorder %s21, 1
      %p111 = por %p109, %p110
      %p112 = scmp.ne.s32.totalorder %s104, %s107
      %p113 = scmp.eq.s32.totalorder %s21, 0
      %p114 = por %p112, %p113
      %p115 = scmp.ne.s32.totalorder %s104, %s107
      %p116 = scmp.eq.s32.totalorder %s26, 1
      %p117 = por %p115, %p116
      %p118 = scmp.ne.s32.totalorder %s107, %s108
      %p119 = scmp.eq.s32.totalorder %s26, 0
      %p120 = por %p118, %p119
      %p121 = scmp.ne.s32.totalorder %s107, %s108
      %p122 = scmp.eq.s32.totalorder %s27, 1
      %p123 = por %p121, %p122
      %p125 = scmp.ne.s32.totalorder %s108, %s124
      %p126 = scmp.eq.s32.totalorder %s27, 0
      %p127 = por %p125, %p126
      %p128 = scmp.le.s32.totalorder 1, %s21
      %p129 = scmp.lt.s32.totalorder %s21, 3
      %p130 = pnand %p128, %p129
      %p131 = pneg %p130
      // Predicated region
      $region9: #{tpu_custom_call.1} parent=5 // pred_check
        _
      $region10: #{tpu_custom_call.1} parent=5 // pred_check_branch
        %133 = sbr.rel (%p130) target = $region12
      $region11: #{tpu_custom_call.1} parent=5 // pred_region
        %s134 = ssub.s32 %s21, 1
        // Predicated region
        $region13: #{tpu_custom_call.1} parent=11 // pred_check
          %p135 = pneg %p42
        $region14: #{tpu_custom_call.1} parent=11 // pred_check_branch
          %137 = sbr.rel (%p135) target = $region16
        $region15: #{tpu_custom_call.1} parent=11 // pred_region
          %s139 = ssub.s32 8192, 8192
          %140 = vsyncadd [#allocation6], %s139
          %s141 = sshll.u32 [#allocation5], 4
          %s142 = int_to_ptr.vmem [resolvable:$true] %s141
          %147 = dma.hbm_to_vmem [thread:$0]  %s1, 8192, %s142, [#allocation6], 128, 128, 8
        $region16: #{tpu_custom_call.1} parent=11 // pred_fallthru
          _
      $region12: #{tpu_custom_call.1} parent=5 // pred_fallthru
        _
      %p148 = scmp.lt.s32.totalorder %s21, 2
      // Predicated region
      $region17: #{tpu_custom_call.1} parent=5 // pred_check
        %p149 = pneg %p148
      $region18: #{tpu_custom_call.1} parent=5 // pred_check_branch
        %151 = sbr.rel (%p149) target = $region20
      $region19: #{tpu_custom_call.1} parent=5 // pred_region
        // Predicated region
        $region21: #{tpu_custom_call.1} parent=19 // pred_check
          %p152 = pneg %p62
        $region22: #{tpu_custom_call.1} parent=19 // pred_check_branch
          %154 = sbr.rel (%p152) target = $region24
        $region23: #{tpu_custom_call.1} parent=19 // pred_region
          %s155 = sand.u32 %s52, 1
          %s156 = scalar_lea.sflag [#allocation9], %s155
          %s157 = sand.u32 %s52, 1
          %s158 = smul.addr %s157, 128
          %s159 = scalar_lea.vmem [#allocation8], %s158
          %s160 = smul.u32 2, %s21
          %s162 = ssub.s32 2048, 2048
          %163 = vsyncadd %s156, %s162
          %s164 = smul.addr %s160, 64
          %s165 = scalar_lea.hbm %s2, %s164
          %s166 = sshll.u32 %s159, 4
          %s167 = int_to_ptr.vmem [resolvable:$true] %s166
          %172 = dma.hbm_to_vmem [thread:$0]  %s165, 2048, %s167, %s156, 256, 128, 8
        $region24: #{tpu_custom_call.1} parent=19 // pred_fallthru
          _
        // Predicated region
        $region25: #{tpu_custom_call.1} parent=19 // pred_check
          %p173 = pneg %p88
        $region26: #{tpu_custom_call.1} parent=19 // pred_check_branch
          %175 = sbr.rel (%p173) target = $region28
        $region27: #{tpu_custom_call.1} parent=19 // pred_region
          %s176 = smul.u32 2, %s21
          %p177 = scmp.lt.s32.totalorder %s176, 3
          %s178 = scalar_select %p177, %s176, 3
          %s179 = scalar_lea.vmem %s3, %s178
          %s180 = smul.u32 2, %s21
        $region28: #{tpu_custom_call.1} parent=19 // pred_fallthru
          _
      $region20: #{tpu_custom_call.1} parent=5 // pred_fallthru
        _
      %p181 = scmp.le.s32.totalorder 1, %s21
      %p182 = scmp.lt.s32.totalorder %s21, 3
      %p183 = pnand %p181, %p182
      %p184 = pneg %p183
      // Predicated region
      $region29: #{tpu_custom_call.1} parent=5 // pred_check
        _
      $region30: #{tpu_custom_call.1} parent=5 // pred_check_branch
        %186 = sbr.rel (%p183) target = $region32
      $region31: #{tpu_custom_call.1} parent=5 // pred_region
        %s187 = ssub.s32 %s21, 1
        // Predicated region
        $region33: #{tpu_custom_call.1} parent=31 // pred_check
          %p188 = pneg %p42
        $region34: #{tpu_custom_call.1} parent=31 // pred_check_branch
          %190 = sbr.rel (%p188) target = $region36
        $region35: #{tpu_custom_call.1} parent=31 // pred_region
          %191 = dma.done [#allocation6], 8192
        $region36: #{tpu_custom_call.1} parent=31 // pred_fallthru
          _
        %s192 = sand.u32 %s55, 1
        %s193 = scalar_lea.sflag [#allocation9], %s192
        %s194 = sand.u32 %s55, 1
        %s195 = smul.addr %s194, 128
        %s196 = scalar_lea.vmem [#allocation8], %s195
        // Predicated region
        $region37: #{tpu_custom_call.1} parent=31 // pred_check
          %p197 = pneg %p68
        $region38: #{tpu_custom_call.1} parent=31 // pred_check_branch
          %199 = sbr.rel (%p197) target = $region40
        $region39: #{tpu_custom_call.1} parent=31 // pred_region
          %200 = dma.done %s193, 2048
        $region40: #{tpu_custom_call.1} parent=31 // pred_fallthru
          _
        %p201 = pneg %p42
        %p202 = pneg %p39
        %s203 = sand.u32 %s55, 1
        %s204 = scalar_lea.sflag [#allocation9], %s203
        %s205 = sand.u32 %s55, 1
        %s206 = smul.addr %s205, 128
        %s207 = scalar_lea.vmem [#allocation8], %s206
        %p208 = pneg %p68
        %p209 = pneg %p65
        %s210 = smul.u32 2, %s26
        %p211 = scmp.lt.s32.totalorder %s210, 3
        %s212 = scalar_select %p211, %s210, 3
        %s213 = scalar_lea.vmem %s3, %s212
        %p214 = pneg %p94
        %p215 = pneg %p91
        %p216 = pneg %p120
        %p217 = pneg %p117
        %s218 = sand.u32 %s107, 1
        %s219 = scalar_lea.sflag [#allocation7], %s218
        %s220 = sand.u32 %s107, 1
        %s221 = smul.addr %s220, 32
        %s222 = scalar_lea.vmem [#allocation10], %s221
        %s223 = smul.u32 2, %s26
        %s224 = smul.u32 2, %s26
        %p225 = scmp.lt.s32.totalorder %s224, 3
        %s226 = scalar_select %p225, %s224, 3
        %s227 = scalar_lea.vmem %s3, %s226
        %s228 = smul.u32 2, %s26
        %s229 = smul.u32 2, %s26
        %s231 = sld [smem:[#allocation4]]
        %s232 = scalar_lea.vmem [#allocation5], %s231
        %v233 = vld [vmem:[%s232] sm:$0x1]
        %234 = vst [vmem:[#allocation2] sm:$0x1] %v233
        %s235 = sld [smem:[#allocation4 + $0x1]]
        %s236 = scalar_lea.vmem [#allocation5], %s235
        %v237 = vld [vmem:[%s236] sm:$0x1]
        %238 = vst [vmem:[#allocation2 + $0x1] sm:$0x1] %v237
        %s239 = sld [smem:[#allocation4 + $0x2]]
        %s240 = scalar_lea.vmem [#allocation5], %s239
        %v241 = vld [vmem:[%s240] sm:$0x1]
        %242 = vst [vmem:[#allocation2 + $0x2] sm:$0x1] %v241
        %s243 = sld [smem:[#allocation4 + $0x3]]
        %s244 = scalar_lea.vmem [#allocation5], %s243
        %v245 = vld [vmem:[%s244] sm:$0x1]
        %246 = vst [vmem:[#allocation2 + $0x3] sm:$0x1] %v245
        %s247 = sld [smem:[#allocation4 + $0x4]]
        %s248 = scalar_lea.vmem [#allocation5], %s247
        %v249 = vld [vmem:[%s248] sm:$0x1]
        %250 = vst [vmem:[#allocation2 + $0x4] sm:$0x1] %v249
        %s251 = sld [smem:[#allocation4 + $0x5]]
        %s252 = scalar_lea.vmem [#allocation5], %s251
        %v253 = vld [vmem:[%s252] sm:$0x1]
        %254 = vst [vmem:[#allocation2 + $0x5] sm:$0x1] %v253
        %s255 = sld [smem:[#allocation4 + $0x6]]
        %s256 = scalar_lea.vmem [#allocation5], %s255
        %v257 = vld [vmem:[%s256] sm:$0x1]
        %258 = vst [vmem:[#allocation2 + $0x6] sm:$0x1] %v257
        %s259 = sld [smem:[#allocation4 + $0x7]]
        %s260 = scalar_lea.vmem [#allocation5], %s259
        %v261 = vld [vmem:[%s260] sm:$0x1]
        %262 = vst [vmem:[#allocation2 + $0x7] sm:$0x1] %v261
        %s263 = sld [smem:[#allocation4 + $0x8]]
        %s264 = scalar_lea.vmem [#allocation5], %s263
        %v265 = vld [vmem:[%s264] sm:$0x1]
        %266 = vst [vmem:[#allocation2 + $0x8] sm:$0x1] %v265
        %s267 = sld [smem:[#allocation4 + $0x9]]
        %s268 = scalar_lea.vmem [#allocation5], %s267
        %v269 = vld [vmem:[%s268] sm:$0x1]
        %270 = vst [vmem:[#allocation2 + $0x9] sm:$0x1] %v269
        %s271 = sld [smem:[#allocation4 + $0xa]]
        %s272 = scalar_lea.vmem [#allocation5], %s271
        %v273 = vld [vmem:[%s272] sm:$0x1]
        %274 = vst [vmem:[#allocation2 + $0xa] sm:$0x1] %v273
        %s275 = sld [smem:[#allocation4 + $0xb]]
        %s276 = scalar_lea.vmem [#allocation5], %s275
        %v277 = vld [vmem:[%s276] sm:$0x1]
        %278 = vst [vmem:[#allocation2 + $0xb] sm:$0x1] %v277
        %s279 = sld [smem:[#allocation4 + $0xc]]
        %s280 = scalar_lea.vmem [#allocation5], %s279
        %v281 = vld [vmem:[%s280] sm:$0x1]
        %282 = vst [vmem:[#allocation2 + $0xc] sm:$0x1] %v281
        %s283 = sld [smem:[#allocation4 + $0xd]]
        %s284 = scalar_lea.vmem [#allocation5], %s283
        %v285 = vld [vmem:[%s284] sm:$0x1]
        %286 = vst [vmem:[#allocation2 + $0xd] sm:$0x1] %v285
        %s287 = sld [smem:[#allocation4 + $0xe]]
        %s288 = scalar_lea.vmem [#allocation5], %s287
        %v289 = vld [vmem:[%s288] sm:$0x1]
        %290 = vst [vmem:[#allocation2 + $0xe] sm:$0x1] %v289
        %s291 = sld [smem:[#allocation4 + $0xf]]
        %s292 = scalar_lea.vmem [#allocation5], %s291
        %v293 = vld [vmem:[%s292] sm:$0x1]
        %294 = vst [vmem:[#allocation2 + $0xf] sm:$0x1] %v293
        %v295 = vld [vmem:[#allocation2] sm:$0xff]
        %v296 = vld [vmem:[#allocation2 + $0x8] sm:$0xff]
        %v297 = vpack.c.bf16 %v296, %v295
        %v298 = vld [vmem:[%s196] sm:$0xff]
        %v299 = vld [vmem:[%s196 + $0x8] sm:$0xff]
        %v300 = vld [vmem:[%s196 + $0x10] sm:$0xff]
        %v301 = vld [vmem:[%s196 + $0x18] sm:$0xff]
        %v302 = vld [vmem:[%s196 + $0x20] sm:$0xff]
        %v303 = vld [vmem:[%s196 + $0x28] sm:$0xff]
        %v304 = vld [vmem:[%s196 + $0x30] sm:$0xff]
        %v305 = vld [vmem:[%s196 + $0x38] sm:$0xff]
        %v306 = vld [vmem:[%s196 + $0x40] sm:$0xff]
        %v307 = vld [vmem:[%s196 + $0x48] sm:$0xff]
        %v308 = vld [vmem:[%s196 + $0x50] sm:$0xff]
        %v309 = vld [vmem:[%s196 + $0x58] sm:$0xff]
        %v310 = vld [vmem:[%s196 + $0x60] sm:$0xff]
        %v311 = vld [vmem:[%s196 + $0x68] sm:$0xff]
        %v312 = vld [vmem:[%s196 + $0x70] sm:$0xff]
        %v313 = vld [vmem:[%s196 + $0x78] sm:$0xff]
        %v314 = vld [vmem:[%s227] sm:$0x3]
        %v316 = vlaneseq
        %v317 = vshrl.u32 %v316, 7
        %v318 = vsub.s32 0, %v317
        %v319 = vrot.slane %v314, %v318
        %v320 = vlaneseq
        %v321 = vshrl.u32 %v320, 7
        %v322 = vsub.s32 1, %v321
        %v323 = vrot.slane %v314, %v322
        %v342 = vunpack.c.l.b16 %v298
        %v343 = vunpack.c.h.b16 %v298
        %v344 = vunpack.c.l.b16 %v299
        %v345 = vunpack.c.h.b16 %v299
        %v346 = vunpack.c.l.b16 %v300
        %v347 = vunpack.c.h.b16 %v300
        %v348 = vunpack.c.l.b16 %v301
        %v349 = vunpack.c.h.b16 %v301
        %v350 = vunpack.c.l.b16 %v302
        %v351 = vunpack.c.h.b16 %v302
        %v352 = vunpack.c.l.b16 %v303
        %v353 = vunpack.c.h.b16 %v303
        %v354 = vunpack.c.l.b16 %v304
        %v355 = vunpack.c.h.b16 %v304
        %v356 = vunpack.c.l.b16 %v305
        %v357 = vunpack.c.h.b16 %v305
        %v358 = vunpack.c.l.b16 %v306
        %v359 = vunpack.c.h.b16 %v306
        %v360 = vunpack.c.l.b16 %v307
        %v361 = vunpack.c.h.b16 %v307
        %v362 = vunpack.c.l.b16 %v308
        %v363 = vunpack.c.h.b16 %v308
        %v364 = vunpack.c.l.b16 %v309
        %v365 = vunpack.c.h.b16 %v309
        %v366 = vunpack.c.l.b16 %v310
        %v367 = vunpack.c.h.b16 %v310
        %v368 = vunpack.c.l.b16 %v311
        %v369 = vunpack.c.h.b16 %v311
        %v370 = vunpack.c.l.b16 %v312
        %v371 = vunpack.c.h.b16 %v312
        %v372 = vunpack.c.l.b16 %v313
        %v373 = vunpack.c.h.b16 %v313
        %v374 = vpack.c.b16 %v344, %v342
        %v375 = vpack.c.b16 %v345, %v343
        %v376 = vpack.c.b16 %v348, %v346
        %v377 = vpack.c.b16 %v349, %v347
        %v378 = vpack.c.b16 %v352, %v350
        %v379 = vpack.c.b16 %v353, %v351
        %v380 = vpack.c.b16 %v356, %v354
        %v381 = vpack.c.b16 %v357, %v355
        %v382 = vpack.c.b16 %v360, %v358
        %v383 = vpack.c.b16 %v361, %v359
        %v384 = vpack.c.b16 %v364, %v362
        %v385 = vpack.c.b16 %v365, %v363
        %v386 = vpack.c.b16 %v368, %v366
        %v387 = vpack.c.b16 %v369, %v367
        %v388 = vpack.c.b16 %v372, %v370
        %v389 = vpack.c.b16 %v373, %v371
        %406 = vmatprep.subr.bf16.mxu0 %v389
        %407 = vmatpush1.bf16.msra.mxu0 %v388
        %408 = vmatprep.subr.bf16.mxu0 %v387
        %409 = vmatpush1.bf16.msra.mxu0 %v386
        %410 = vmatprep.subr.bf16.mxu0 %v385
        %411 = vmatpush1.bf16.msra.mxu0 %v384
        %412 = vmatprep.subr.bf16.mxu0 %v383
        %413 = vmatpush1.bf16.msra.mxu0 %v382
        %414 = vmatprep.subr.bf16.mxu0 %v381
        %415 = vmatpush1.bf16.msra.mxu0 %v380
        %416 = vmatprep.subr.bf16.mxu0 %v379
        %417 = vmatpush1.bf16.msra.mxu0 %v378
        %418 = vmatprep.subr.bf16.mxu0 %v377
        %419 = vmatpush1.bf16.msra.mxu0 %v376
        %420 = vmatprep.subr.bf16.mxu0 %v375
        %421 = vmatpush1.bf16.msra.mxu0 %v374
        %422 = vmatprep.subr.bf16.mxu0 0
        %423 = vmatpush2.bf16.msra.mxu0 0
        %424 = vmatprep.subr.bf16.mxu0 0
        %425 = vmatpush2.bf16.msra.mxu0 0
        %426 = vmatprep.subr.bf16.mxu0 0
        %427 = vmatpush2.bf16.msra.mxu0 0
        %428 = vmatprep.subr.bf16.mxu0 0
        %429 = vmatpush2.bf16.msra.mxu0 0
        %430 = vmatprep.subr.bf16.mxu0 0
        %431 = vmatpush2.bf16.msra.mxu0 0
        %432 = vmatprep.subr.bf16.mxu0 0
        %433 = vmatpush2.bf16.msra.mxu0 0
        %434 = vmatprep.subr.bf16.mxu0 0
        %435 = vmatpush2.bf16.msra.mxu0 0
        %436 = vmatprep.subr.bf16.mxu0 0
        %437 = vmatpush2.bf16.msra.mxu0 0
        %438 = vmatprep.mubr.bf16.mxu0 0
        %439 = vmatmul.mubr.bf16.gmra.mxu0 %v297
        %v440 = vpop.f32.mrf.mxu0
        %v441 = vadd.f32 %v319, %v440
        %v442 = vpop.f32.mrf.mxu0
        %v443 = vadd.f32 %v323, %v442
        %v444 = vpop.f32.mrf.mxu0
        %v445 = vadd.f32 %v319, %v444
        %v446 = vpop.f32.mrf.mxu0
        %v447 = vadd.f32 %v323, %v446
        %448 = vdwg.mxu0
        %449 = vst [vmem:[%s222] sm:$0xff] %v441
        %450 = vst [vmem:[%s222 + $0x8] sm:$0xff] %v443
        %451 = vst [vmem:[%s222 + $0x10] sm:$0xff] %v445
        %452 = vst [vmem:[%s222 + $0x18] sm:$0xff] %v447
        %s453 = sand.u32 %s107, 1
        %s454 = scalar_lea.sflag [#allocation7], %s453
        %s455 = sand.u32 %s107, 1
        %s456 = smul.addr %s455, 32
        %s457 = scalar_lea.vmem [#allocation10], %s456
        // Predicated region
        $region41: #{tpu_custom_call.1} parent=31 // pred_check
          %p458 = pneg %p117
        $region42: #{tpu_custom_call.1} parent=31 // pred_check_branch
          %460 = sbr.rel (%p458) target = $region44
        $region43: #{tpu_custom_call.1} parent=31 // pred_region
          %s461 = smul.u32 2, %s26
          %s463 = ssub.s32 512, 512
          %464 = vsyncadd %s454, %s463
          %s465 = smul.addr %s461, 128
          %s466 = scalar_lea.hbm %s4, %s465
          %s467 = sshll.u32 %s457, 4
          %s468 = int_to_ptr.vmem [resolvable:$true] %s467
          %473 = dma.vmem_to_hbm [thread:$0]  %s468, 512, %s466, %s454, 256, 512, 16
        $region44: #{tpu_custom_call.1} parent=31 // pred_fallthru
          _
      $region32: #{tpu_custom_call.1} parent=5 // pred_fallthru
        _
      %p474 = scmp.le.s32.totalorder 2, %s21
      // Predicated region
      $region45: #{tpu_custom_call.1} parent=5 // pred_check
        %p475 = pneg %p474
      $region46: #{tpu_custom_call.1} parent=5 // pred_check_branch
        %477 = sbr.rel (%p475) target = $region48
      $region47: #{tpu_custom_call.1} parent=5 // pred_region
        %s478 = ssub.s32 %s21, 2
        // Predicated region
        $region49: #{tpu_custom_call.1} parent=47 // pred_check
          %p479 = pneg %p123
        $region50: #{tpu_custom_call.1} parent=47 // pred_check_branch
          %481 = sbr.rel (%p479) target = $region52
        $region51: #{tpu_custom_call.1} parent=47 // pred_region
          %s482 = sand.u32 %s108, 1
          %s483 = scalar_lea.sflag [#allocation7], %s482
          %s484 = sand.u32 %s108, 1
          %s485 = smul.addr %s484, 32
          %s486 = scalar_lea.vmem [#allocation10], %s485
          %487 = dma.done %s483, 512
        $region52: #{tpu_custom_call.1} parent=47 // pred_fallthru
          _
      $region48: #{tpu_custom_call.1} parent=5 // pred_fallthru
        _
    $region6: #{tpu_custom_call.1} parent=1 // loop_footer
      %s25 = sadd.s32 1, %s21
    $region7: #{tpu_custom_call.1} parent=1 // loop_footer_branch
      %20 = sbr.rel target = $region3
    $region8: #{tpu_custom_call.1} parent=1 // loop_exit
      _
    %488 = vsyncpa [#allocation6], 1
    %s489 = scalar_lea.sflag [#allocation6], 1
    %490 = vsyncpa %s489, 1
    %491 = vsyncpa [#allocation9], 1
    %s492 = scalar_lea.sflag [#allocation9], 1
    %493 = vsyncpa %s492, 1
    %494 = vsyncpa [#allocation7], 1
    %s495 = scalar_lea.sflag [#allocation7], 1
    %496 = vsyncpa %s495, 1

</llo_original>
